<compile_context>
chip_gen: v5e
topology: v5e:2x2
jax: 0.10.0
libtpu: 0.0.40
codegen_flags: <defaults>
</compile_context>

<pallas_src>
import functools
import math

import jax
import jax.numpy as jnp
from jax.experimental import pallas as pl
from jax.experimental.pallas import tpu as pltpu


_LANE = 128
_SUBLANE = 8
_MAX_LANE_TILE = 2048  # largest full-extent lane tile we take unragged


def _round_down(x, m):
    return (x // m) * m


def _cdiv(a, b):
    return -(-a // b)


def _native_sublane(itemsize):
    """Dtype-aware sublane tile height: f32 -> 8, bf16/f16 -> 16, int8/fp8 -> 32."""
    return _SUBLANE * max(1, 4 // max(itemsize, 1))


@functools.lru_cache(maxsize=1)
def _default_block_bytes():
    """Bigger blocks on 128 MiB-VMEM parts (v5e/v6e); conservative elsewhere."""
    try:
        info = pltpu.get_tpu_info()
        vmem = getattr(info, "vmem_capacity_bytes", None)
        if vmem is not None and int(vmem) >= 100 * 1024 * 1024:
            return 12 * 1024 * 1024
    except Exception:  # pragma: no cover - hardware query is best-effort
        pass
    return 6 * 1024 * 1024  # safe on v7x (64 MiB physical VMEM) and unknown chips


@functools.lru_cache(maxsize=1)
def _detect_num_tensorcores():
    """Best-effort TensorCore count (v7x has 2 per chip). Falls back to 1."""
    try:
        info = pltpu.get_tpu_info()
    except Exception:  # pragma: no cover
        return 1
    for name in ("num_tensorcores", "tensorcore_count", "num_cores", "core_count"):
        v = getattr(info, name, None)
        try:
            v = int(v)
        except (TypeError, ValueError):
            continue
        if v > 0:
            return v
    return 1


# ---------------------------------------------------------------------------
# Kernels
# ---------------------------------------------------------------------------


def _mean_kernel_direct(x_ref, o_ref, *, inv_r, reduce_axis):
    """Single-R-tile case: no accumulator scratch, direct lane-dense store."""
    x = x_ref[...]
    if x.dtype != jnp.float32:
        x = x.astype(jnp.float32)
    o_ref[...] = (jnp.sum(x, axis=reduce_axis) * inv_r).astype(o_ref.dtype)


def _mean_kernel_acc(x_ref, o_ref, acc_ref, *, inv_r, reduce_axis, r_grid_axis,
                     tile_r, r_total, need_mask):
    """Partial sums accumulate over the R grid axis; mean is stored at the end.

    Ragged tiles of the *parallel* axes sum padded garbage into `acc_ref`, but
    those rows/lanes only ever land in the masked part of the output block
    store (positions never mix along R), so they never reach HBM.
    """
    k = pl.program_id(r_grid_axis)
    last = pl.num_programs(r_grid_axis) - 1

    @pl.when(k == 0)
    def _init():
        acc_ref[...] = jnp.zeros_like(acc_ref)

    x = x_ref[...]
    if x.dtype != jnp.float32:
        x = x.astype(jnp.float32)

    if need_mask:
        # Only the final R tile is ragged: keep every other step's accumulate
        # free of the iota/compare/select VPU filler.
        @pl.when(k < last)
        def _accum():
            acc_ref[...] += jnp.sum(x, axis=reduce_axis)

        @pl.when(k == last)
        def _accum_masked():
            idx = jax.lax.broadcasted_iota(jnp.int32, x.shape, reduce_axis)
            xm = jnp.where(k * tile_r + idx < r_total, x, 0.0)
            acc_ref[...] += jnp.sum(xm, axis=reduce_axis)
    else:
        acc_ref[...] += jnp.sum(x, axis=reduce_axis)

    @pl.when(k == last)
    def _finish():
        o_ref[...] = (acc_ref[...] * inv_r).astype(o_ref.dtype)


# ---------------------------------------------------------------------------
# Tile selection
# ---------------------------------------------------------------------------


def _choose_tiles_mid(pre, r, post, sub, budget_elems):
    """Tiles for reducing the middle axis of (pre, r, post). Block = (a, r, b)."""
    # Lane (trailing) axis: take the FULL extent when moderate — full-extent
    # blocks are legal even when not 128-multiples, and unragged lane-dense
    # output tiles avoid masked vst.msk stores.  Only chunk for huge post.
    if post <= _MAX_LANE_TILE:
        tile_b = post
    else:
        tile_b = min(1024, _round_down(post, _LANE))

    max_rows = max(1, budget_elems // tile_b)          # budget for tile_a * tile_r
    min_a = pre if pre < sub else sub

    if r * min_a <= max_rows:
        # Whole reduction extent fits in one block: single R tile, no scratch.
        tile_r = r
        if pre <= sub:
            tile_a = pre
        else:
            tile_a = max(sub, min(_round_down(max_rows // r, sub),
                                  _round_down(pre, sub)))
    else:
        # Split R; accumulate across the last ("arbitrary") grid axis.
        tile_a = min_a
        if r <= sub:
            tile_r = r
        else:
            tile_r = max(sub, min(_round_down(max_rows // tile_a, sub),
                                  _round_down(r, sub)))
    return tile_a, tile_r, tile_b


def _choose_tiles_last(pre, r, budget_elems):
    """Tiles for reducing the trailing axis. Block = (1, tile_p, tile_r)."""
    # r sits on lanes: take the whole extent when it fits (unragged, single R
    # tile -> direct kernel), otherwise a wide 128-multiple chunk.
    lane_cap = max(_LANE, min(_MAX_LANE_TILE,
                              _round_down(budget_elems // max(1, min(pre, _LANE)),
                                          _LANE)))
    if r <= lane_cap or r <= _LANE:
        tile_r = r
    else:
        tile_r = min(lane_cap, _round_down(r, _LANE))

    max_p = max(1, budget_elems // tile_r)
    if pre <= _LANE:
        tile_p = pre
    else:
        tile_p = max(_LANE, min(_round_down(max_p, _LANE),
                                _round_down(pre, _LANE), 2048))
    return tile_p, tile_r


def _split_tiles_for_cores(tile_a, tile_b, sub):
    """Halve one parallel tile so a 2-TensorCore chip (v7x) gets >= 2 tiles."""
    if tile_a >= 2 * sub:
        return max(sub, _round_down(_cdiv(tile_a, 2), sub)), tile_b
    if tile_b >= 2 * _LANE:
        return tile_a, max(_LANE, _round_down(_cdiv(tile_b, 2), _LANE))
    if tile_a >= 2:
        return _cdiv(tile_a, 2), tile_b
    return tile_a, tile_b


# ---------------------------------------------------------------------------
# Public entry point
# ---------------------------------------------------------------------------


def avg_pool_flexible_dimension(x, dim, *, block_bytes=None,
                                min_pallas_bytes=1 << 20,
                                force_pallas=False, num_cores=None):
    """Equivalent of AvgPoolFlexibleDimension(dim)(x) == x.mean(dim=dim).

    Output dtype == input dtype on every path (f32 accumulation, cast back).
    """
    ndim = x.ndim
    if dim < 0:
        dim += ndim
    assert 0 <= dim < ndim, (
        "dim {} out of range for tensor of rank {}".format(dim, ndim))

    shape = x.shape
    out_nd_shape = shape[:dim] + shape[dim + 1:]
    r = shape[dim]
    itemsize = jnp.dtype(x.dtype).itemsize

    # Empty reduction axis or tiny inputs: defer to XLA (launch overhead
    # dominates) but keep the same dtype contract as the Pallas path.
    if r == 0 or (not force_pallas and x.size * itemsize < min_pallas_bytes):
        return jnp.mean(x, axis=dim, dtype=jnp.float32).astype(x.dtype)

    if block_bytes is None:
        block_bytes = _default_block_bytes()
    if num_cores is None:
        num_cores = _detect_num_tensorcores()

    pre = math.prod(shape[:dim])
    post = math.prod(shape[dim + 1:])
    sub = _native_sublane(itemsize)
    # Budget in ELEMENTS: narrow dtypes get the same element count as f32 so
    # the in-kernel f32 upcast temp never exceeds ~block_bytes (v7x: 64 MiB VMEM).
    budget_elems = max(1, block_bytes // max(itemsize, 4))
    inv_r = 1.0 / float(r)

    if post == 1:
        # `dim` is the trailing (contiguous) axis.  Keep a dummy leading ARRAY
        # axis so the output block (1, tile_p) is lane-dense (pre on lanes)
        # instead of 1-wide masked stores; the GRID has no dummy axis.
        x3 = x.reshape(1, pre, r)
        tile_p, tile_r = _choose_tiles_last(pre, r, budget_elems)
        a_t = _cdiv(pre, tile_p)
        k_t = _cdiv(r, tile_r)
        # v7x megacore: make sure both TensorCores get a parallel tile.
        if num_cores >= 2 and a_t == 1 and pre > _LANE:
            tile_p = max(_LANE, _round_down(_cdiv(tile_p, 2), _LANE))
            a_t = _cdiv(pre, tile_p)
        out2_shape = (1, pre)
        reduce_axis = 2
        if k_t == 1:
            kernel = functools.partial(_mean_kernel_direct, inv_r=inv_r,
                                       reduce_axis=reduce_axis)
            grid = (a_t,)
            in_specs = [pl.BlockSpec((1, tile_p, tile_r), lambda i: (0, i, 0))]
            out_specs = pl.BlockSpec((1, tile_p), lambda i: (0, i))
            scratch_shapes = ()
            dims = ("parallel",)
        else:
            kernel = functools.partial(
                _mean_kernel_acc, inv_r=inv_r, reduce_axis=reduce_axis,
                r_grid_axis=1, tile_r=tile_r, r_total=r,
                need_mask=(r % tile_r) != 0)
            grid = (a_t, k_t)
            in_specs = [pl.BlockSpec((1, tile_p, tile_r),
                                     lambda i, k: (0, i, k))]
            out_specs = pl.BlockSpec((1, tile_p), lambda i, k: (0, i))
            scratch_shapes = (pltpu.VMEM((1, tile_p), jnp.float32),)
            dims = ("parallel", "arbitrary")
        in_arr = x3
    else:
        # General case: reduce the middle axis of (pre, r, post).
        # TODO(synk): for 1 < post < 128 the output tiles are still lane-masked
        # (<128-wide stores); a lane-dense flattened-output variant needs an
        # in-kernel (tile_a, post)->(tile_a*post,) relayout and is left out.
        x3 = x.reshape(pre, r, post)
        tile_a, tile_r, tile_b = _choose_tiles_mid(pre, r, post, sub,
                                                   budget_elems)
        a_t = _cdiv(pre, tile_a)
        b_t = _cdiv(post, tile_b)
        k_t = _cdiv(r, tile_r)
        if num_cores >= 2 and a_t * b_t == 1:
            tile_a, tile_b = _split_tiles_for_cores(tile_a, tile_b, sub)
            a_t = _cdiv(pre, tile_a)
            b_t = _cdiv(post, tile_b)
        out2_shape = (pre, post)
        reduce_axis = 1
        if k_t == 1:
            kernel = functools.partial(_mean_kernel_direct, inv_r=inv_r,
                                       reduce_axis=reduce_axis)
            grid = (a_t, b_t)
            in_specs = [pl.BlockSpec((tile_a, tile_r, tile_b),
                                     lambda i, j: (i, 0, j))]
            out_specs = pl.BlockSpec((tile_a, tile_b), lambda i, j: (i, j))
            scratch_shapes = ()
            dims = ("parallel", "parallel")
        else:
            kernel = functools.partial(
                _mean_kernel_acc, inv_r=inv_r, reduce_axis=reduce_axis,
                r_grid_axis=2, tile_r=tile_r, r_total=r,
                need_mask=(r % tile_r) != 0)
            grid = (a_t, b_t, k_t)
            in_specs = [pl.BlockSpec((tile_a, tile_r, tile_b),
                                     lambda i, j, k: (i, k, j))]
            out_specs = pl.BlockSpec((tile_a, tile_b), lambda i, j, k: (i, j))
            scratch_shapes = (pltpu.VMEM((tile_a, tile_b), jnp.float32),)
            dims = ("parallel", "parallel", "arbitrary")
        in_arr = x3

    # Peak VMEM ≈ 2x double-buffered input + f32 upcast temp + acc/out blocks.
    vmem_limit = int(min(96 * 1024 * 1024,
                         max(40 * 1024 * 1024, 4 * block_bytes)))

    out2 = pl.pallas_call(
        kernel,
        out_shape=jax.ShapeDtypeStruct(out2_shape, x.dtype),
        grid_spec=pltpu.PrefetchScalarGridSpec(
            num_scalar_prefetch=0,
            grid=grid,
            in_specs=in_specs,
            out_specs=out_specs,
            scratch_shapes=scratch_shapes,
        ),
        compiler_params=pltpu.CompilerParams(
            dimension_semantics=dims,
            vmem_limit_bytes=vmem_limit,
        ),
    )(in_arr)

    return out2.reshape(out_nd_shape)


class AvgPoolFlexibleDimensionPallas:
    """Thin wrapper mirroring the PyTorch module (no parameters)."""

    def __init__(self, dim, force_pallas=False):
        self.dim = dim
        self.force_pallas = force_pallas
        self.is_layer_built = False

    def build(self, input_shape):
        assert len(input_shape) >= self.dim, (
            "Length of shape is smaller than {}".format(self.dim))
        out_shape = input_shape[: self.dim] + input_shape[self.dim + 1:]
        self.is_layer_built = True
        print("Build ", self.__class__.__name__, "with input shape",
              input_shape, "with output shape", out_shape)

    def __call__(self, x):
        assert len(x.shape) >= self.dim, (
            "Length of shape is smaller than {}".format(self.dim))
        if not self.is_layer_built:
            self.build(input_shape=x.shape)
        return avg_pool_flexible_dimension(
            x, self.dim, force_pallas=self.force_pallas)


if __name__ == "__main__":
    key = jax.random.PRNGKey(0)
    k0, k1, k2, k3 = jax.random.split(key, 4)

    # Demo 1: NCHW input, pool over channels (dim=1): [2,4,16,16] -> [2,16,16]
    # (mid-axis path, single R tile -> direct kernel, full-extent lane tile).
    x = jax.random.normal(k0, (2, 4, 16, 16), dtype=jnp.float32)
    layer = AvgPoolFlexibleDimensionPallas(dim=1, force_pallas=True)
    out = jax.block_until_ready(layer(x))
    ref = jnp.mean(x, axis=1)
    assert out.shape == ref.shape, (out.shape, ref.shape)
    assert jnp.allclose(out, ref, atol=1e-5, rtol=1e-5), "mismatch (dim=1)"

    # Demo 2: pool over the trailing axis (post == 1, lane-dense output,
    # dummy grid axis removed, direct kernel).
    out_last = jax.block_until_ready(
        avg_pool_flexible_dimension(x, dim=3, force_pallas=True))
    ref_last = jnp.mean(x, axis=3)
    assert out_last.shape == ref_last.shape
    assert jnp.allclose(out_last, ref_last, atol=1e-5, rtol=1e-5), \
        "mismatch (dim=last)"

    # Demo 3: split-reduction path (accumulator scratch, ragged-R mask applied
    # only on the last step) forced with a tiny per-block budget.
    x2 = jax.random.normal(k1, (4, 100, 3, 64), dtype=jnp.float32)
    out_split = jax.block_until_ready(
        avg_pool_flexible_dimension(x2, dim=1, block_bytes=16 * 1024,
                                    force_pallas=True))
    ref_split = jnp.mean(x2, axis=1)
    assert out_split.shape == ref_split.shape
    assert jnp.allclose(out_split, ref_split, atol=1e-5, rtol=1e-5), \
        "mismatch (split reduction)"

    # Demo 4: bf16 input (dtype-aware 16-row sublane tiling, in-kernel f32
    # accumulation, cast back to bf16), split-reduction path.
    x3 = jax.random.normal(k2, (2, 64, 8, 32), dtype=jnp.bfloat16)
    out_bf16 = jax.block_until_ready(
        avg_pool_flexible_dimension(x3, dim=1, block_bytes=16 * 1024,
                                    force_pallas=True))
    ref_bf16 = jnp.mean(x3.astype(jnp.float32), axis=1).astype(jnp.bfloat16)
    assert out_bf16.shape == ref_bf16.shape and out_bf16.dtype == jnp.bfloat16
    assert jnp.allclose(out_bf16.astype(jnp.float32),
                        ref_bf16.astype(jnp.float32),
                        atol=1e-2, rtol=1e-2), "mismatch (bf16)"

    # Demo 5: trailing-axis split-reduction path (accumulator + ragged-R mask
    # along the lane axis) forced with a tiny budget.
    x4 = jax.random.normal(k3, (8, 500), dtype=jnp.float32)
    out_tail = jax.block_until_ready(
        avg_pool_flexible_dimension(x4, dim=1, block_bytes=8 * 1024,
                                    force_pallas=True))
    ref_tail = jnp.mean(x4, axis=1)
    assert out_tail.shape == ref_tail.shape
    assert jnp.allclose(out_tail, ref_tail, atol=1e-5, rtol=1e-5), \
        "mismatch (trailing-axis split)"

    print("KERNEL_OK")
</pallas_src>

<mosaic_0001>
module attributes {stable_mosaic.version = 11 : i64} {
  func.func @_mean_kernel_direct(%arg0: i32, %arg1: i32, %arg2: memref<2x4x256xf32, #tpu.memory_space<vmem>>, %arg3: memref<2x256xf32, #tpu.memory_space<vmem>>) attributes {dimension_semantics = [#tpu.dimension_semantics<parallel>, #tpu.dimension_semantics<parallel>], iteration_bounds = array<i64: 1, 1>, scalar_prefetch = 0 : i64, scratch_operands = 0 : i64, tpu.core_type = #tpu.core_type<tc>, window_params = [{transform_indices = @transform_0, window_bounds = array<i64: 2, 4, 256>}, {transform_indices = @transform_1, window_bounds = array<i64: 2, 256>}]} {
    %c0 = arith.constant 0 : index
    %c0_0 = arith.constant 0 : index
    %c0_1 = arith.constant 0 : index
    %0 = vector.load %arg2[%c0, %c0_0, %c0_1] : memref<2x4x256xf32, #tpu.memory_space<vmem>>, vector<2x4x256xf32>
    %cst = arith.constant dense<0.000000e+00> : vector<2x256xf32>
    %1 = vector.multi_reduction <add>, %0, %cst [1] : vector<2x4x256xf32> to vector<2x256xf32>
    %cst_2 = arith.constant 2.500000e-01 : f32
    %2 = vector.broadcast %cst_2 : f32 to vector<2x256xf32>
    %3 = arith.mulf %1, %2 : vector<2x256xf32>
    %c0_3 = arith.constant 0 : index
    %c0_4 = arith.constant 0 : index
    %4 = vector.load %arg3[%c0_3, %c0_4] : memref<2x256xf32, #tpu.memory_space<vmem>>, vector<2x256xf32>
    tpu.vector_store %arg3[%c0_3, %c0_4], %3 {strides = array<i32>} : memref<2x256xf32, #tpu.memory_space<vmem>>, vector<2x256xf32>,
    return
  }
  func.func @transform_0(%arg0: i32, %arg1: i32) -> (i32, i32, i32) {
    %c0_i32 = arith.constant 0 : i32
    %c0_i32_0 = arith.constant 0 : i32
    return %arg0, %c0_i32, %arg1 : i32, i32, i32
  }
  func.func @transform_1(%arg0: i32, %arg1: i32) -> (i32, i32) {
    %c0_i32 = arith.constant 0 : i32
    return %arg0, %arg1 : i32, i32
  }
}

</mosaic_0001>

<llo_original>
// kernel: tpu_custom_call.1
$region0: #{tpu_custom_call.1}
  #allocation0 [shape = 'u32[]', space=smem, size = 0x4, offset = 0x4, fixed_abs, tag = 'smem constant byte address 0x4 - core index']
  #allocation1 [shape = 'u32[72,128]{1,0:T(1,128)}', space=vmem, size = 0x9000, scoped, tag = 'internal scratch']
  %s0 = inlined_call_operand.hbm [shape: f32[2,4,256], index: 0, kind: input, shape index: {}]
  %s1 = inlined_call_operand.hbm [shape: f32[2,256], index: 1, kind: output, shape index: {}]
  %s2 = sld [smem:[#allocation0]]
  $region18: #{tpu_custom_call.1} parent=0
    _
  %s4 = ssub.s32 1, %s2
  %s5 = scalar_select 0, %s4, %s2
  $region1: #{tpu_custom_call.1} parent=0
    #allocation2 [shape = 'u8[8192]{0}', space=vmem, size = 0x2000, scoped, tag = 'input window, operand 0, single buffered']
    #allocation3 [shape = 's32[1]{0}', space=sflag, size = 0x4, scoped, tag = 'scoped memory for tpu_custom_call.1']
    #allocation4 [shape = 's32[1]{0}', space=sflag, size = 0x4, scoped, tag = 'scoped memory for tpu_custom_call.1']
    #allocation5 [shape = 'u8[2048]{0}', space=vmem, size = 0x800, scoped, tag = 'output window, operand 0, single buffered']
    %6 = vsyncpa [#allocation3], 0
    %7 = vsyncpa [#allocation4], 0
    // Predicated region
    $region2: #{tpu_custom_call.1} parent=1 // pred_check
      _
    $region3: #{tpu_custom_call.1} parent=1 // pred_check_branch
      %9 = sbr.rel (0) target = $region5
    $region4: #{tpu_custom_call.1} parent=1 // pred_region
      %11 = vsyncadd [#allocation3], 0
      %s12 = sshll.u32 %s0, 4
      %s13 = int_to_ptr.hbm [resolvable:$true] %s12
      %s14 = sshll.u32 [#allocation2], 4
      %s15 = int_to_ptr.vmem [resolvable:$true] %s14
      %20 = dma.hbm_to_vmem [thread:$0]  %s13, 256, %s15, [#allocation3], 128, 128, 8
    $region5: #{tpu_custom_call.1} parent=1 // pred_fallthru
      _
    // Predicated region
    $region6: #{tpu_custom_call.1} parent=1 // pred_check
      _
    $region7: #{tpu_custom_call.1} parent=1 // pred_check_branch
      %22 = sbr.rel (0) target = $region9
    $region8: #{tpu_custom_call.1} parent=1 // pred_region
      %24 = dma.done [#allocation3], 256
    $region9: #{tpu_custom_call.1} parent=1 // pred_fallthru
      _
    %v25 = vld [vmem:[#allocation2] sm:$0xff]
    %v26 = vld [vmem:[#allocation2 + $0x8] sm:$0xff]
    %29 = vst [vmem:[#allocation1] ss:$2 sm:$0xff] %v25
    %v30 = vld.sshfl [vmem:[#allocation1] sm:$0xff pattern:$0x75316420]
    %v31 = vld.sshfl [vmem:[#allocation1 + $0x8] sm:$0xff pattern:$0x75316420]
    %s32 = scalar_lea.vmem [#allocation1], 16
    %33 = vst [vmem:[%s32] ss:$2 sm:$0xff] %v26
    %v34 = vld.sshfl [vmem:[#allocation1 + $0x10] sm:$0xff pattern:$0x75316420]
    %v35 = vld.sshfl [vmem:[#allocation1 + $0x18] sm:$0xff pattern:$0x75316420]
    %vm40 = vcmask 1043456
    %v41 = vsel %vm40, %v30, 0.0
    %v42 = vrot.slane %v41, 4
    %v43 = vadd.f32 %v41, %v42
    %v44 = vrot.slane %v43, 2
    %v45 = vadd.f32 %v43, %v44
    %v46 = vrot.slane %v45, 1
    %v47 = vadd.f32 %v45, %v46
    %v48 = vsel %vm40, %v31, 0.0
    %v49 = vrot.slane %v48, 4
    %v50 = vadd.f32 %v48, %v49
    %v51 = vrot.slane %v50, 2
    %v52 = vadd.f32 %v50, %v51
    %v53 = vrot.slane %v52, 1
    %v54 = vadd.f32 %v52, %v53
    %v55 = vsel %vm40, %v34, 0.0
    %v56 = vrot.slane %v55, 4
    %v57 = vadd.f32 %v55, %v56
    %v58 = vrot.slane %v57, 2
    %v59 = vadd.f32 %v57, %v58
    %v60 = vrot.slane %v59, 1
    %v61 = vadd.f32 %v59, %v60
    %v62 = vsel %vm40, %v35, 0.0
    %v63 = vrot.slane %v62, 4
    %v64 = vadd.f32 %v62, %v63
    %v65 = vrot.slane %v64, 2
    %v66 = vadd.f32 %v64, %v65
    %v67 = vrot.slane %v66, 1
    %v68 = vadd.f32 %v66, %v67
    %v69 = vmul.f32 %v47, 0.25
    %v70 = vmul.f32 %v54, 0.25
    %v71 = vmul.f32 %v61, 0.25
    %v72 = vmul.f32 %v68, 0.25
    %v77 = vrot.slane %v70, 6
    %v78 = vrot.slane %v72, 6
    %vm79 = vcmask 1041408
    %v80 = vsel %vm79, %v69, %v77
    %v81 = vsel %vm79, %v71, %v78
    %vm82 = vcmask 1044484
    %v83 = vsel %vm82, %v80, %v80
    %vm84 = vcmask 1046534
    %v85 = vsel %vm84, %v80, %v83
    %v86 = vrot.slane %v81, 7
    %vm87 = vcmask 1041409
    %v88 = vsel %vm87, %v86, %v85
    %vm89 = vcmask 1043459
    %v90 = vsel %vm89, %v86, %v88
    %vm91 = vcmask 1045509
    %v92 = vsel %vm91, %v86, %v90
    %vm93 = vcmask 1047559
    %v94 = vsel %vm93, %v86, %v92
    %96 = vst [vmem:[#allocation5] sm:$0xf] %v94
    // Predicated region
    $region10: #{tpu_custom_call.1} parent=1 // pred_check
      _
    $region11: #{tpu_custom_call.1} parent=1 // pred_check_branch
      %98 = sbr.rel (0) target = $region13
    $region12: #{tpu_custom_call.1} parent=1 // pred_region
      %100 = vsyncadd [#allocation4], 0
      %s102 = sshll.u32 [#allocation5], 4
      %s103 = int_to_ptr.vmem [resolvable:$true] %s102
      %s104 = sshll.u32 %s1, 4
      %s105 = int_to_ptr.hbm [resolvable:$true] %s104
      %107 = dma.vmem_to_hbm [thread:$0]  %s103, 64, %s105, [#allocation4]
    $region13: #{tpu_custom_call.1} parent=1 // pred_fallthru
      _
    // Predicated region
    $region14: #{tpu_custom_call.1} parent=1 // pred_check
      _
    $region15: #{tpu_custom_call.1} parent=1 // pred_check_branch
      %109 = sbr.rel (0) target = $region17
    $region16: #{tpu_custom_call.1} parent=1 // pred_region
      %111 = dma.done [#allocation4], 64
    $region17: #{tpu_custom_call.1} parent=1 // pred_fallthru
      _
    %112 = vsyncpa [#allocation3], 1
    %113 = vsyncpa [#allocation4], 1

</llo_original>
